<compile_context>
chip_gen: v7x
topology: tpu7x:2x2x1
jax: 0.10.0
libtpu: 0.0.40
codegen_flags: <defaults>
</compile_context>

<pallas_src>
import functools

import numpy as np

import jax
import jax.numpy as jnp
from jax.experimental import pallas as pl
from jax.experimental.pallas import tpu as pltpu


# ----------------------------------------------------------------------------
# Kernels
# ----------------------------------------------------------------------------
def bert_output_kernel(h_ref, res_ref, w_ref, b_ref, g_ref, beta_ref, o_ref,
                       *, eps, n_row_chunks):
    """1-D row-tiled variant: resident bf16 weight, full K per step."""
    w = w_ref[...]                                   # bf16, resident across grid
    bias = b_ref[...].astype(jnp.float32)
    gamma = g_ref[...].astype(jnp.float32)
    beta = beta_ref[...].astype(jnp.float32)

    rows = h_ref.shape[0] // n_row_chunks
    # Static 2-way row split: two independent matmul->LayerNorm chains let the
    # VLIW scheduler hide the VPU/XLU/EUP epilogue under MXU pushes (v7x win,
    # neutral elsewhere).
    for c in range(n_row_chunks):
        sl = pl.ds(c * rows, rows)
        a = h_ref[sl, :].astype(jnp.bfloat16)        # in-kernel cast (no-op if bf16)
        x = jnp.dot(a, w, preferred_element_type=jnp.float32) + bias

        # Dropout is identity in eval mode.
        # TODO(synk): training-mode dropout would build a keep-mask with
        # pltpu.prng_seed / pltpu.prng_random_bits.

        x = x + res_ref[sl, :].astype(jnp.float32)   # residual add (f32)

        mean = jnp.mean(x, axis=-1, keepdims=True)
        centered = x - mean
        var = jnp.mean(centered * centered, axis=-1, keepdims=True)
        inv = jax.lax.rsqrt(var + eps)               # EUP slot (effectively free)
        y = centered * (inv * gamma) + beta          # gamma folded into inv std
        o_ref[sl, :] = y.astype(o_ref.dtype)


def bert_output_ktiled_kernel(h_ref, res_ref, w_ref, b_ref, g_ref, beta_ref,
                              o_ref, acc_ref, *, eps):
    """2-D (rows, K) variant for when the resident weight won't fit VMEM."""
    k = pl.program_id(1)

    @pl.when(k == 0)
    def _():
        acc_ref[...] = jnp.zeros_like(acc_ref)

    a = h_ref[...].astype(jnp.bfloat16)
    acc_ref[...] += jnp.dot(a, w_ref[...], preferred_element_type=jnp.float32)

    @pl.when(k == pl.num_programs(1) - 1)
    def _():
        x = acc_ref[...] + b_ref[...].astype(jnp.float32)
        # Dropout is identity in eval mode.
        x = x + res_ref[...].astype(jnp.float32)
        mean = jnp.mean(x, axis=-1, keepdims=True)
        centered = x - mean
        var = jnp.mean(centered * centered, axis=-1, keepdims=True)
        inv = jax.lax.rsqrt(var + eps)
        y = centered * (inv * g_ref[...].astype(jnp.float32)) \
            + beta_ref[...].astype(jnp.float32)
        o_ref[...] = y.astype(o_ref.dtype)


# ----------------------------------------------------------------------------
# One-time (cached) hardware / feature probes
# ----------------------------------------------------------------------------
@functools.lru_cache(maxsize=None)
def _vmem_capacity_bytes():
    try:
        return int(pltpu.get_tpu_info().vmem_capacity_bytes)
    except Exception:
        return 64 << 20  # conservative default (v7x per-TC VMEM)


@functools.lru_cache(maxsize=None)
def _buffered1_supported():
    """Probe pl.Buffered(1) single-buffering once per process."""
    try:
        def k(x_ref, o_ref):
            o_ref[...] = x_ref[...]

        x = jnp.zeros((8, 128), jnp.float32)
        f = pl.pallas_call(
            k,
            out_shape=jax.ShapeDtypeStruct((16, 128), jnp.float32),
            grid=(2,),
            in_specs=[pl.BlockSpec((8, 128), lambda i: (0, 0),
                                   pipeline_mode=pl.Buffered(1))],
            out_specs=pl.BlockSpec((8, 128), lambda i: (i, 0)),
        )
        jax.block_until_ready(f(x))
        return True
    except Exception:
        return False


# ----------------------------------------------------------------------------
# Planning (generation-aware tiling + VMEM budget)
# ----------------------------------------------------------------------------
def _pick_tm(M, tm_cap):
    cands = [c for c in (1024, 512, 256, 128, 64, 32, 16) if c <= tm_cap]
    # Prefer >= 4 grid steps with an even count so v7x's two TCs each get a
    # primed (>= 2 step) pipeline under dimension_semantics=("parallel",).
    for c in cands:
        if M % c == 0 and (M // c) >= 4 and (M // c) % 2 == 0:
            return c
    for c in cands:
        if M % c == 0 and (M // c) >= 2:
            return c
    return M  # tiny/odd M: single full-extent block


def _plan(M, I, H, act_bytes, res_bytes, out_bytes, tm, tk, single_buf):
    vmem_cap = _vmem_capacity_bytes()
    budget = int(vmem_cap * 0.8)          # leave headroom for compiler scratch
    nbuf_const = 1 if single_buf else 2

    def need_1d(tm_):
        return (2 * tm_ * I * act_bytes
                + 2 * tm_ * H * (res_bytes + out_bytes)
                + nbuf_const * (I * H * 2 + 3 * H * 4))

    def need_kt(tm_, tk_):
        return (2 * tm_ * tk_ * act_bytes
                + 2 * tk_ * H * 2
                + 2 * tm_ * H * (res_bytes + out_bytes)
                + tm_ * H * 4
                + nbuf_const * 3 * H * 4)

    tm_cap = 1024 if vmem_cap >= (96 << 20) else 512   # derate on v7x (64 MiB)
    if tm is None:
        tm = _pick_tm(M, tm_cap)
    assert M % tm == 0, f"tm={tm} must divide M={M} (pad/mask upstream otherwise)"

    if tk is not None:
        assert I % tk == 0 and (tk % 128 == 0 or tk == I), \
            "tk must divide I and be a multiple of 128"
        need = need_kt(tm, tk)
    elif need_1d(tm) <= budget:
        need = need_1d(tm)
    else:
        # Resident (I, H) weight no longer fits beside the pipelined tiles
        # (first hit on v7x's 64 MiB) -> tile the reduction axis, keep tm big.
        for cand in (2048, 1024, 512, 256, 128):
            if cand < I and I % cand == 0 and need_kt(tm, cand) <= budget:
                tk = cand
                break
        if tk is None:
            while tm >= 32 and need_1d(tm) > budget:
                tm //= 2
            need = need_1d(tm)
        else:
            need = need_kt(tm, tk)

    vmem_limit = max(need + (4 << 20), 32 << 20)
    vmem_limit = min(vmem_limit, int(vmem_cap * 0.9))
    vmem_limit = max(vmem_limit, need)
    return tm, tk, int(vmem_limit)


# ----------------------------------------------------------------------------
# pallas_call builder (cached: one build/compile per shape+dtype+plan)
# ----------------------------------------------------------------------------
@functools.lru_cache(maxsize=None)
def _build_call(M, I, H, tm, tk, act_bytes, res_bytes, out_dtype, eps,
                single_buf, vmem_limit):
    out_dtype = np.dtype(out_dtype)
    out_bytes = out_dtype.itemsize

    const_kwargs = {"pipeline_mode": pl.Buffered(1)} if single_buf else {}

    cost = pl.CostEstimate(
        flops=2 * M * I * H,
        transcendentals=M,  # one rsqrt per row
        bytes_accessed=(M * I * act_bytes + I * H * 2
                        + M * H * (res_bytes + out_bytes) + 3 * H * 4),
    )

    if tk is None:
        n_row_chunks = 2 if (tm % 32 == 0 and tm >= 64) else 1
        kernel = functools.partial(bert_output_kernel, eps=eps,
                                   n_row_chunks=n_row_chunks)
        grid = (M // tm,)
        in_specs = [
            pl.BlockSpec((tm, I), lambda i: (i, 0)),                 # activations
            pl.BlockSpec((tm, H), lambda i: (i, 0)),                 # residual
            pl.BlockSpec((I, H), lambda i: (0, 0), **const_kwargs),  # weight (bf16)
            pl.BlockSpec((1, H), lambda i: (0, 0), **const_kwargs),  # bias
            pl.BlockSpec((1, H), lambda i: (0, 0), **const_kwargs),  # gamma
            pl.BlockSpec((1, H), lambda i: (0, 0), **const_kwargs),  # beta
        ]
        out_specs = pl.BlockSpec((tm, H), lambda i: (i, 0))
        scratch = ()
        dims = ("parallel",)
    else:
        kernel = functools.partial(bert_output_ktiled_kernel, eps=eps)
        grid = (M // tm, I // tk)
        in_specs = [
            pl.BlockSpec((tm, tk), lambda i, k: (i, k)),
            pl.BlockSpec((tm, H), lambda i, k: (i, 0)),
            pl.BlockSpec((tk, H), lambda i, k: (k, 0)),
            pl.BlockSpec((1, H), lambda i, k: (0, 0), **const_kwargs),
            pl.BlockSpec((1, H), lambda i, k: (0, 0), **const_kwargs),
            pl.BlockSpec((1, H), lambda i, k: (0, 0), **const_kwargs),
        ]
        out_specs = pl.BlockSpec((tm, H), lambda i, k: (i, 0))
        scratch = (pltpu.VMEM((tm, H), jnp.float32),)
        dims = ("parallel", "arbitrary")

    return pl.pallas_call(
        kernel,
        out_shape=jax.ShapeDtypeStruct((M, H), out_dtype),
        grid_spec=pltpu.PrefetchScalarGridSpec(
            num_scalar_prefetch=0,
            grid=grid,
            in_specs=in_specs,
            out_specs=out_specs,
            scratch_shapes=scratch,
        ),
        compiler_params=pltpu.CompilerParams(
            dimension_semantics=dims,
            vmem_limit_bytes=int(vmem_limit),
        ),
        cost_estimate=cost,
    )


# ----------------------------------------------------------------------------
# Public wrappers
# ----------------------------------------------------------------------------
def prepare_params(w, b, gamma, beta):
    """Cast parameters once, outside the hot path (w -> bf16, vectors -> f32 (1,H))."""
    I, H = w.shape
    return (jnp.asarray(w, jnp.bfloat16),
            jnp.asarray(b, jnp.float32).reshape(1, H),
            jnp.asarray(gamma, jnp.float32).reshape(1, H),
            jnp.asarray(beta, jnp.float32).reshape(1, H))


def bert_output(hidden_states, input_tensor, w, b, gamma, beta,
                *, eps=1e-12, tm=None, tk=None, out_dtype=None):
    """hidden_states: (M, I); input_tensor: (M, H); w: (I, H); b/gamma/beta: (H,) or (1, H)."""
    M, I = hidden_states.shape
    M2, H = input_tensor.shape
    assert M2 == M

    # Parameters: ideally already prepared via prepare_params() (no per-call cast).
    if w.dtype != jnp.bfloat16:
        w = w.astype(jnp.bfloat16)  # NOTE: prefer prepare_params() to avoid this per-call pass
    assert w.shape == (I, H)
    b2 = jnp.asarray(b, jnp.float32).reshape(1, H)
    g2 = jnp.asarray(gamma, jnp.float32).reshape(1, H)
    beta2 = jnp.asarray(beta, jnp.float32).reshape(1, H)

    out_dtype = np.dtype(input_tensor.dtype if out_dtype is None else out_dtype)
    act_bytes = np.dtype(hidden_states.dtype).itemsize
    res_bytes = np.dtype(input_tensor.dtype).itemsize

    single_buf = _buffered1_supported()
    tm, tk, vmem_limit = _plan(M, I, H, act_bytes, res_bytes,
                               out_dtype.itemsize, tm, tk, single_buf)

    call = _build_call(M, I, H, tm, tk, act_bytes, res_bytes, out_dtype,
                       float(eps), bool(single_buf), int(vmem_limit))
    # No host sync here: let the result overlap with surrounding XLA work.
    return call(hidden_states, input_tensor, w, b2, g2, beta2)


def bert_output_ref(hidden_states, input_tensor, w, b, gamma, beta, eps=1e-12):
    # Mirrors the kernel's bf16 matmul operands so tolerances stay tight.
    hs = hidden_states.astype(jnp.bfloat16).astype(jnp.float32)
    wf = w.astype(jnp.bfloat16).astype(jnp.float32)
    x = hs @ wf + b.reshape(-1).astype(jnp.float32)
    x = x + input_tensor.astype(jnp.float32)
    mean = jnp.mean(x, axis=-1, keepdims=True)
    var = jnp.mean((x - mean) ** 2, axis=-1, keepdims=True)
    y = (x - mean) * jax.lax.rsqrt(var + eps)
    y = y * gamma.reshape(-1).astype(jnp.float32) + beta.reshape(-1).astype(jnp.float32)
    return y.astype(input_tensor.dtype)


# ----------------------------------------------------------------------------
# Demo / self-test
# ----------------------------------------------------------------------------
if __name__ == "__main__":
    key = jax.random.PRNGKey(0)
    k1, k2, k3, k4 = jax.random.split(key, 4)

    # Small but lane-dense (H multiple of 128) shapes; M=32 -> tm=16, grid=(2,).
    batch, seq = 2, 16
    intermediate_size, hidden_size = 256, 128
    layer_norm_eps = 1e-12  # NOTE: in f32, eps this small adds no stabilization margin
    M = batch * seq

    hidden_states = jax.random.normal(k1, (M, intermediate_size), dtype=jnp.float32)
    input_tensor = jax.random.normal(k2, (M, hidden_size), dtype=jnp.float32)

    bound = 1.0 / (intermediate_size ** 0.5)
    w = jax.random.uniform(k3, (intermediate_size, hidden_size),
                           minval=-bound, maxval=bound, dtype=jnp.float32)
    b = jax.random.uniform(k4, (hidden_size,),
                           minval=-bound, maxval=bound, dtype=jnp.float32)
    gamma = jnp.ones((hidden_size,), dtype=jnp.float32)
    beta = jnp.zeros((hidden_size,), dtype=jnp.float32)

    # One-time parameter preparation (weight cast happens here, not per call).
    w_bf, b2, g2, beta2 = prepare_params(w, b, gamma, beta)

    ref = bert_output_ref(hidden_states, input_tensor, w, b, gamma, beta,
                          eps=layer_norm_eps)

    # 1) Default 1-D row-tiled path, f32 I/O.
    out = jax.block_until_ready(
        bert_output(hidden_states, input_tensor, w_bf, b2, g2, beta2,
                    eps=layer_norm_eps))
    assert out.shape == (M, hidden_size) and out.dtype == input_tensor.dtype
    assert jnp.allclose(out, ref, atol=1e-3, rtol=1e-3), "1-D path mismatch"

    # 2) Forced K-tiled path (the accumulator/epilogue variant used when the
    #    resident weight would not fit VMEM, e.g. v7x with large I).
    out_kt = jax.block_until_ready(
        bert_output(hidden_states, input_tensor, w_bf, b2, g2, beta2,
                    eps=layer_norm_eps, tk=128))
    assert jnp.allclose(out_kt, ref, atol=1e-3, rtol=1e-3), "K-tiled path mismatch"

    # 3) bf16 activations + residual passed straight through (low-HBM path).
    hs_bf = hidden_states.astype(jnp.bfloat16)
    res_bf = input_tensor.astype(jnp.bfloat16)
    out_bf = jax.block_until_ready(
        bert_output(hs_bf, res_bf, w_bf, b2, g2, beta2, eps=layer_norm_eps))
    ref_bf = bert_output_ref(hs_bf, res_bf, w, b, gamma, beta, eps=layer_norm_eps)
    assert out_bf.dtype == jnp.bfloat16
    assert jnp.allclose(out_bf.astype(jnp.float32), ref_bf.astype(jnp.float32),
                        atol=3e-2, rtol=3e-2), "bf16 I/O path mismatch"

    print("KERNEL_OK")
</pallas_src>

<mosaic_0001>
module attributes {stable_mosaic.version = 11 : i64} {
  func.func @k(%arg0: i32, %arg1: memref<8x128xf32, #tpu.memory_space<vmem>>, %arg2: memref<8x128xf32, #tpu.memory_space<vmem>>) attributes {dimension_semantics = [#tpu.dimension_semantics<arbitrary>], iteration_bounds = array<i64: 2>, scalar_prefetch = 0 : i64, scratch_operands = 0 : i64, tpu.core_type = #tpu.core_type<tc>, window_params = [{pipeline_mode = #tpu.pipeline_mode<synchronous>, transform_indices = @transform_0, window_bounds = array<i64: 8, 128>}, {transform_indices = @transform_1, window_bounds = array<i64: 8, 128>}]} {
    %c0 = arith.constant 0 : index
    %c0_0 = arith.constant 0 : index
    %0 = vector.load %arg1[%c0, %c0_0] : memref<8x128xf32, #tpu.memory_space<vmem>>, vector<8x128xf32>
    %c0_1 = arith.constant 0 : index
    %c0_2 = arith.constant 0 : index
    %1 = vector.load %arg2[%c0_1, %c0_2] : memref<8x128xf32, #tpu.memory_space<vmem>>, vector<8x128xf32>
    tpu.vector_store %arg2[%c0_1, %c0_2], %0 {strides = array<i32>} : memref<8x128xf32, #tpu.memory_space<vmem>>, vector<8x128xf32>,
    return
  }
  func.func @transform_0(%arg0: i32) -> (i32, i32) {
    %c0_i32 = arith.constant 0 : i32
    %c0_i32_0 = arith.constant 0 : i32
    %c0_i32_1 = arith.constant 0 : i32
    return %c0_i32, %c0_i32_0 : i32, i32
  }
  func.func @transform_1(%arg0: i32) -> (i32, i32) {
    %c0_i32 = arith.constant 0 : i32
    %c0_i32_0 = arith.constant 0 : i32
    return %arg0, %c0_i32 : i32, i32
  }
}

module attributes {stable_mosaic.version = 11 : i64} {
  func.func @bert_output_kernel(%arg0: i32, %arg1: memref<16x256xf32, #tpu.memory_space<vmem>>, %arg2: memref<16x128xf32, #tpu.memory_space<vmem>>, %arg3: memref<256x128xbf16, #tpu.memory_space<vmem>>, %arg4: memref<1x128xf32, #tpu.memory_space<vmem>>, %arg5: memref<1x128xf32, #tpu.memory_space<vmem>>, %arg6: memref<1x128xf32, #tpu.memory_space<vmem>>, %arg7: memref<16x128xf32, #tpu.memory_space<vmem>>) attributes {dimension_semantics = [#tpu.dimension_semantics<parallel>], iteration_bounds = array<i64: 2>, scalar_prefetch = 0 : i64, scratch_operands = 0 : i64, tpu.core_type = #tpu.core_type<tc>, window_params = [{transform_indices = @transform_0, window_bounds = array<i64: 16, 256>}, {transform_indices = @transform_1, window_bounds = array<i64: 16, 128>}, {pipeline_mode = #tpu.pipeline_mode<synchronous>, transform_indices = @transform_2, window_bounds = array<i64: 256, 128>}, {pipeline_mode = #tpu.pipeline_mode<synchronous>, transform_indices = @transform_3, window_bounds = array<i64: 1, 128>}, {pipeline_mode = #tpu.pipeline_mode<synchronous>, transform_indices = @transform_4, window_bounds = array<i64: 1, 128>}, {pipeline_mode = #tpu.pipeline_mode<synchronous>, transform_indices = @transform_5, window_bounds = array<i64: 1, 128>}, {transform_indices = @transform_6, window_bounds = array<i64: 16, 128>}]} {
    %c0 = arith.constant 0 : index
    %c0_0 = arith.constant 0 : index
    %0 = vector.load %arg3[%c0, %c0_0] : memref<256x128xbf16, #tpu.memory_space<vmem>>, vector<256x128xbf16>
    %c0_1 = arith.constant 0 : index
    %c0_2 = arith.constant 0 : index
    %1 = vector.load %arg4[%c0_1, %c0_2] : memref<1x128xf32, #tpu.memory_space<vmem>>, vector<1x128xf32>
    %c0_3 = arith.constant 0 : index
    %c0_4 = arith.constant 0 : index
    %2 = vector.load %arg5[%c0_3, %c0_4] : memref<1x128xf32, #tpu.memory_space<vmem>>, vector<1x128xf32>
    %c0_5 = arith.constant 0 : index
    %c0_6 = arith.constant 0 : index
    %3 = vector.load %arg6[%c0_5, %c0_6] : memref<1x128xf32, #tpu.memory_space<vmem>>, vector<1x128xf32>
    %c0_7 = arith.constant 0 : index
    %c0_8 = arith.constant 0 : index
    %4 = vector.load %arg1[%c0_7, %c0_8] : memref<16x256xf32, #tpu.memory_space<vmem>>, vector<16x256xf32>
    %5 = arith.truncf %4 : vector<16x256xf32> to vector<16x256xbf16>
    %cst = arith.constant dense<0.000000e+00> : vector<16x128xf32>
    %6 = tpu.matmul %5, %0, %cst {dimension_numbers = #tpu.dot_dimension_numbers<[1], [0], [0], [1], [0, 0, 1, 1], [], []>} : vector<16x256xbf16>, vector<256x128xbf16>, vector<16x128xf32> -> vector<16x128xf32>
    %7 = vector.broadcast %1 : vector<1x128xf32> to vector<16x128xf32>
    %8 = arith.addf %6, %7 : vector<16x128xf32>
    %c0_9 = arith.constant 0 : index
    %c0_10 = arith.constant 0 : index
    %9 = vector.load %arg2[%c0_9, %c0_10] : memref<16x128xf32, #tpu.memory_space<vmem>>, vector<16x128xf32>
    %10 = arith.addf %8, %9 : vector<16x128xf32>
    %cst_11 = arith.constant dense<0.000000e+00> : vector<16xf32>
    %11 = vector.multi_reduction <add>, %10, %cst_11 [1] : vector<16x128xf32> to vector<16xf32>
    %12 = vector.shape_cast %11 : vector<16xf32> to vector<16x1xf32>
    %cst_12 = arith.constant 1.280000e+02 : f32
    %13 = vector.broadcast %cst_12 : f32 to vector<16x1xf32>
    %14 = arith.divf %12, %13 : vector<16x1xf32>
    %15 = vector.broadcast %14 : vector<16x1xf32> to vector<16x128xf32>
    %16 = arith.subf %10, %15 : vector<16x128xf32>
    %17 = arith.mulf %16, %16 : vector<16x128xf32>
    %cst_13 = arith.constant dense<0.000000e+00> : vector<16xf32>
    %18 = vector.multi_reduction <add>, %17, %cst_13 [1] : vector<16x128xf32> to vector<16xf32>
    %19 = vector.shape_cast %18 : vector<16xf32> to vector<16x1xf32>
    %cst_14 = arith.constant 1.280000e+02 : f32
    %20 = vector.broadcast %cst_14 : f32 to vector<16x1xf32>
    %21 = arith.divf %19, %20 : vector<16x1xf32>
    %cst_15 = arith.constant 9.99999996E-13 : f32
    %22 = vector.broadcast %cst_15 : f32 to vector<16x1xf32>
    %23 = arith.addf %21, %22 : vector<16x1xf32>
    %24 = math.rsqrt %23 : vector<16x1xf32>
    %25 = vector.broadcast %24 : vector<16x1xf32> to vector<16x128xf32>
    %26 = vector.broadcast %2 : vector<1x128xf32> to vector<16x128xf32>
    %27 = arith.mulf %25, %26 : vector<16x128xf32>
    %28 = arith.mulf %16, %27 : vector<16x128xf32>
    %29 = vector.broadcast %3 : vector<1x128xf32> to vector<16x128xf32>
    %30 = arith.addf %28, %29 : vector<16x128xf32>
    %c0_16 = arith.constant 0 : index
    %c0_17 = arith.constant 0 : index
    %31 = vector.load %arg7[%c0_16, %c0_17] : memref<16x128xf32, #tpu.memory_space<vmem>>, vector<16x128xf32>
    tpu.vector_store %arg7[%c0_16, %c0_17], %30 {strides = array<i32>} : memref<16x128xf32, #tpu.memory_space<vmem>>, vector<16x128xf32>,
    return
  }
  func.func @transform_0(%arg0: i32) -> (i32, i32) {
    %c0_i32 = arith.constant 0 : i32
    %c0_i32_0 = arith.constant 0 : i32
    return %arg0, %c0_i32 : i32, i32
  }
  func.func @transform_1(%arg0: i32) -> (i32, i32) {
    %c0_i32 = arith.constant 0 : i32
    %c0_i32_0 = arith.constant 0 : i32
    return %arg0, %c0_i32 : i32, i32
  }
  func.func @transform_2(%arg0: i32) -> (i32, i32) {
    %c0_i32 = arith.constant 0 : i32
    %c0_i32_0 = arith.constant 0 : i32
    %c0_i32_1 = arith.constant 0 : i32
    return %c0_i32, %c0_i32_0 : i32, i32
  }
  func.func @transform_3(%arg0: i32) -> (i32, i32) {
    %c0_i32 = arith.constant 0 : i32
    %c0_i32_0 = arith.constant 0 : i32
    %c0_i32_1 = arith.constant 0 : i32
    return %c0_i32, %c0_i32_0 : i32, i32
  }
  func.func @transform_4(%arg0: i32) -> (i32, i32) {
    %c0_i32 = arith.constant 0 : i32
    %c0_i32_0 = arith.constant 0 : i32
    %c0_i32_1 = arith.constant 0 : i32
    return %c0_i32, %c0_i32_0 : i32, i32
  }
  func.func @transform_5(%arg0: i32) -> (i32, i32) {
    %c0_i32 = arith.constant 0 : i32
    %c0_i32_0 = arith.constant 0 : i32
    %c0_i32_1 = arith.constant 0 : i32
    return %c0_i32, %c0_i32_0 : i32, i32
  }
  func.func @transform_6(%arg0: i32) -> (i32, i32) {
    %c0_i32 = arith.constant 0 : i32
    %c0_i32_0 = arith.constant 0 : i32
    return %arg0, %c0_i32 : i32, i32
  }
}

</mosaic_0001>

<llo_original>
// kernel: tpu_custom_call.1
$region0: #{tpu_custom_call.1}
  #allocation0 [shape = 'u32[]', space=smem, size = 0x4, offset = 0x4, fixed_abs, tag = 'smem constant byte address 0x4 - core index']
  #allocation1 [shape = 'u32[144,128]{1,0:T(1,128)}', space=vmem, size = 0x12000, scoped, tag = 'internal scratch']
  %s0 = inlined_call_operand.hbm [shape: f32[8,128], index: 0, kind: input, shape index: {}]
  %s1 = inlined_call_operand.hbm [shape: f32[16,128], index: 1, kind: output, shape index: {}]
  %s2 = sld [smem:[#allocation0]]
  $region41: #{tpu_custom_call.1} parent=0
    _
  %s4 = ssub.s32 1, %s2
  %s5 = scalar_select 0, %s4, %s2
  $region1: #{tpu_custom_call.1} parent=0
    #allocation2 [shape = 'u8[4096]{0}', space=vmem, size = 0x1000, scoped, tag = 'input window, operand 0, single buffered']
    #allocation3 [shape = 's32[2]{0}', space=sflag, size = 0x8, scoped, tag = 'scoped memory for tpu_custom_call.1']
    #allocation4 [shape = 's32[2]{0}', space=sflag, size = 0x8, scoped, tag = 'scoped memory for tpu_custom_call.1']
    #allocation5 [shape = 'u8[8192]{0}', space=vmem, size = 0x2000, scoped, tag = 'output window, operand 0']
    %6 = vsyncpa [#allocation3], 0
    %7 = vsyncpa [#allocation4], 0
    %s8 = scalar_lea.sflag [#allocation4], 1
    %9 = vsyncpa %s8, 0
    loop: start=0, step=1, limit=4
    $region2: #{tpu_custom_call.1} parent=1 // loop_pre_header
      _
    $region3: #{tpu_custom_call.1} parent=1 // loop_header
      %s11 = sphi 0, %s15
      %p12 = scmp.ge.s32.totalorder %s11, 4
      %s19 = sphi 0, %s19
      %s21 = sphi 0, %s19
      %s22 = sphi 0, %s21
      %s36 = sphi 0, %s22
      %s42 = sphi 0, %s44
      %s45 = sphi 0, %s42
      %s46 = sphi 0, %s45
      %s62 = sphi 0, %s46
    $region4: #{tpu_custom_call.1} parent=1 // loop_header_branch
      %14 = sbr.rel (%p12) target = $region8
    $region5: #{tpu_custom_call.1} parent=1 // loop_body
      %s16 = ssub.s32 %s11, 1
      %s17 = ssub.s32 %s11, 2
      %s18 = sadd.s32 %s11, 1
      %s20 = sadd.s32 %s19, 1
      %p23 = scmp.eq.s32.totalorder %s11, 1
      %p24 = scmp.ne.s32.totalorder %s19, %s21
      %p25 = scmp.eq.s32.totalorder %s11, 0
      %p26 = por %p24, %p25
      %p27 = scmp.ne.s32.totalorder %s19, %s21
      %p28 = scmp.eq.s32.totalorder %s16, 1
      %p29 = por %p27, %p28
      %p30 = scmp.ne.s32.totalorder %s21, %s22
      %p31 = scmp.eq.s32.totalorder %s16, 0
      %p32 = por %p30, %p31
      %p33 = scmp.ne.s32.totalorder %s21, %s22
      %p34 = scmp.eq.s32.totalorder %s17, 1
      %p35 = por %p33, %p34
      %p37 = scmp.ne.s32.totalorder %s22, %s36
      %p38 = scmp.eq.s32.totalorder %s17, 0
      %p39 = por %p37, %p38
      %s40 = ssub.s32 %s11, %s18
      %p41 = scmp.eq.s32.totalorder %s40, 0
      %s43 = sadd.s32 %s42, 1
      %s44 = scalar_select %p41, %s42, %s43
      %p47 = pneg %p41
      %p48 = scmp.eq.s32.totalorder %s11, 1
      %p49 = por %p47, %p48
      %p50 = scmp.ne.s32.totalorder %s42, %s45
      %p51 = scmp.eq.s32.totalorder %s11, 0
      %p52 = por %p50, %p51
      %p53 = scmp.ne.s32.totalorder %s42, %s45
      %p54 = scmp.eq.s32.totalorder %s16, 1
      %p55 = por %p53, %p54
      %p56 = scmp.ne.s32.totalorder %s45, %s46
      %p57 = scmp.eq.s32.totalorder %s16, 0
      %p58 = por %p56, %p57
      %p59 = scmp.ne.s32.totalorder %s45, %s46
      %p60 = scmp.eq.s32.totalorder %s17, 1
      %p61 = por %p59, %p60
      %p63 = scmp.ne.s32.totalorder %s46, %s62
      %p64 = scmp.eq.s32.totalorder %s17, 0
      %p65 = por %p63, %p64
      %p66 = scmp.le.s32.totalorder 1, %s11
      %p67 = scmp.lt.s32.totalorder %s11, 3
      %p68 = pnand %p66, %p67
      %p69 = pneg %p68
      // Predicated region
      $region9: #{tpu_custom_call.1} parent=5 // pred_check
        _
      $region10: #{tpu_custom_call.1} parent=5 // pred_check_branch
        %71 = sbr.rel (%p68) target = $region12
      $region11: #{tpu_custom_call.1} parent=5 // pred_region
        %s72 = ssub.s32 %s11, 1
        // Predicated region
        $region13: #{tpu_custom_call.1} parent=11 // pred_check
          %p73 = pneg %p32
        $region14: #{tpu_custom_call.1} parent=11 // pred_check_branch
          %75 = sbr.rel (%p73) target = $region16
        $region15: #{tpu_custom_call.1} parent=11 // pred_region
          %s77 = ssub.s32 128, 128
          %78 = vsyncadd [#allocation3], %s77
          %s80 = sshll.u32 [#allocation2], 4
          %s81 = int_to_ptr.vmem [resolvable:$true] %s80
          %83 = dma.hbm_to_vmem [thread:$0]  %s0, 128, %s81, [#allocation3]
        $region16: #{tpu_custom_call.1} parent=11 // pred_fallthru
          _
      $region12: #{tpu_custom_call.1} parent=5 // pred_fallthru
        _
      %p84 = scmp.lt.s32.totalorder %s11, 2
      // Predicated region
      $region17: #{tpu_custom_call.1} parent=5 // pred_check
        %p85 = pneg %p84
      $region18: #{tpu_custom_call.1} parent=5 // pred_check_branch
        %87 = sbr.rel (%p85) target = $region20
      $region19: #{tpu_custom_call.1} parent=5 // pred_region
        _
      $region20: #{tpu_custom_call.1} parent=5 // pred_fallthru
        _
      %p88 = scmp.le.s32.totalorder 1, %s11
      %p89 = scmp.lt.s32.totalorder %s11, 3
      %p90 = pnand %p88, %p89
      %p91 = pneg %p90
      // Predicated region
      $region21: #{tpu_custom_call.1} parent=5 // pred_check
        _
      $region22: #{tpu_custom_call.1} parent=5 // pred_check_branch
        %93 = sbr.rel (%p90) target = $region24
      $region23: #{tpu_custom_call.1} parent=5 // pred_region
        %s94 = ssub.s32 %s11, 1
        // Predicated region
        $region25: #{tpu_custom_call.1} parent=23 // pred_check
          %p95 = pneg %p32
        $region26: #{tpu_custom_call.1} parent=23 // pred_check_branch
          %97 = sbr.rel (%p95) target = $region28
        $region27: #{tpu_custom_call.1} parent=23 // pred_region
          %98 = dma.done [#allocation3], 128
        $region28: #{tpu_custom_call.1} parent=23 // pred_fallthru
          _
        %p99 = pneg %p32
        %p100 = pneg %p29
        %p101 = pneg %p58
        %p102 = pneg %p55
        %s103 = sand.u32 %s45, 1
        %s104 = scalar_lea.sflag [#allocation4], %s103
        %s105 = sand.u32 %s45, 1
        %s106 = smul.addr %s105, 8
        %s107 = scalar_lea.vmem [#allocation5], %s106
        %v108 = vld [vmem:[#allocation2] sm:$0xff]
        %109 = vst [vmem:[%s107] sm:$0xff] %v108
        %s110 = sand.u32 %s45, 1
        %s111 = scalar_lea.sflag [#allocation4], %s110
        %s112 = sand.u32 %s45, 1
        %s113 = smul.addr %s112, 8
        %s114 = scalar_lea.vmem [#allocation5], %s113
        // Predicated region
        $region29: #{tpu_custom_call.1} parent=23 // pred_check
          %p115 = pneg %p55
        $region30: #{tpu_custom_call.1} parent=23 // pred_check_branch
          %117 = sbr.rel (%p115) target = $region32
        $region31: #{tpu_custom_call.1} parent=23 // pred_region
          %s119 = ssub.s32 128, 128
          %120 = vsyncadd %s111, %s119
          %s121 = smul.addr %s16, 128
          %s122 = scalar_lea.hbm %s1, %s121
          %s124 = sshll.u32 %s114, 4
          %s125 = int_to_ptr.vmem [resolvable:$true] %s124
          %127 = dma.vmem_to_hbm [thread:$0]  %s125, 128, %s122, %s111
        $region32: #{tpu_custom_call.1} parent=23 // pred_fallthru
          _
      $region24: #{tpu_custom_call.1} parent=5 // pred_fallthru
        _
      %p128 = scmp.le.s32.totalorder 2, %s11
      // Predicated region
      $region33: #{tpu_custom_call.1} parent=5 // pred_check
        %p129 = pneg %p128
      $region34: #{tpu_custom_call.1} parent=5 // pred_check_branch
        %131 = sbr.rel (%p129) target = $region36
      $region35: #{tpu_custom_call.1} parent=5 // pred_region
        %s132 = ssub.s32 %s11, 2
        // Predicated region
        $region37: #{tpu_custom_call.1} parent=35 // pred_check
          %p133 = pneg %p61
        $region38: #{tpu_custom_call.1} parent=35 // pred_check_branch
          %135 = sbr.rel (%p133) target = $region40
        $region39: #{tpu_custom_call.1} parent=35 // pred_region
          %s136 = sand.u32 %s46, 1
          %s137 = scalar_lea.sflag [#allocation4], %s136
          %s138 = sand.u32 %s46, 1
          %s139 = smul.addr %s138, 8
          %s140 = scalar_lea.vmem [#allocation5], %s139
          %141 = dma.done %s137, 128
        $region40: #{tpu_custom_call.1} parent=35 // pred_fallthru
          _
      $region36: #{tpu_custom_call.1} parent=5 // pred_fallthru
        _
    $region6: #{tpu_custom_call.1} parent=1 // loop_footer
      %s15 = sadd.s32 1, %s11
    $region7: #{tpu_custom_call.1} parent=1 // loop_footer_branch
      %10 = sbr.rel target = $region3
    $region8: #{tpu_custom_call.1} parent=1 // loop_exit
      _
    %142 = vsyncpa [#allocation3], 1
    %s143 = scalar_lea.sflag [#allocation3], 1
    %144 = vsyncpa %s143, 1
    %145 = vsyncpa [#allocation4], 1
    %s146 = scalar_lea.sflag [#allocation4], 1
    %147 = vsyncpa %s146, 1

// kernel: tpu_custom_call.1
$region0: #{tpu_custom_call.1}
  #allocation0 [shape = 'u32[]', space=smem, size = 0x4, offset = 0x4, fixed_abs, tag = 'smem constant byte address 0x4 - core index']
  #allocation1 [shape = 'u32[144,128]{1,0:T(1,128)}', space=vmem, size = 0x12000, scoped, tag = 'internal scratch']
  %s0 = inlined_call_operand.hbm [shape: f32[32,256], index: 0, kind: input, shape index: {}]
  %s1 = inlined_call_operand.hbm [shape: f32[32,128], index: 1, kind: input, shape index: {}]
  %s2 = inlined_call_operand.hbm [shape: bf16[256,128], index: 2, kind: input, shape index: {}]
  %s3 = inlined_call_operand.vmem [shape: f32[1,128], index: 3, kind: input, shape index: {}]
  %s4 = inlined_call_operand.vmem [shape: f32[1,128], index: 4, kind: input, shape index: {}]
  %s5 = inlined_call_operand.vmem [shape: f32[1,128], index: 5, kind: input, shape index: {}]
  %s6 = inlined_call_operand.hbm [shape: f32[32,128], index: 6, kind: output, shape index: {}]
  %s7 = sld [smem:[#allocation0]]
  $region69: #{tpu_custom_call.1} parent=0
    _
  %s9 = ssub.s32 1, %s7
  %s10 = scalar_select 0, %s9, %s7
  $region1: #{tpu_custom_call.1} parent=0
    #allocation2 [shape = 'u8[32768]{0}', space=vmem, size = 0x8000, scoped, tag = 'input window, operand 0']
    #allocation3 [shape = 's32[2]{0}', space=sflag, size = 0x8, scoped, tag = 'scoped memory for tpu_custom_call.1']
    #allocation4 [shape = 's32[2]{0}', space=sflag, size = 0x8, scoped, tag = 'scoped memory for tpu_custom_call.1']
    #allocation5 [shape = 'u8[16384]{0}', space=vmem, size = 0x4000, scoped, tag = 'input window, operand 1']
    #allocation6 [shape = 's32[2]{0}', space=sflag, size = 0x8, scoped, tag = 'scoped memory for tpu_custom_call.1']
    #allocation7 [shape = 'u8[65536]{0}', space=vmem, size = 0x10000, scoped, tag = 'input window, operand 2, single buffered']
    #allocation8 [shape = 'u8[16384]{0}', space=vmem, size = 0x4000, scoped, tag = 'output window, operand 0']
    %11 = vsyncpa [#allocation3], 0
    %s12 = scalar_lea.sflag [#allocation3], 1
    %13 = vsyncpa %s12, 0
    %14 = vsyncpa [#allocation6], 0
    %s15 = scalar_lea.sflag [#allocation6], 1
    %16 = vsyncpa %s15, 0
    %17 = vsyncpa [#allocation4], 0
    %s18 = scalar_lea.sflag [#allocation4], 1
    %19 = vsyncpa %s18, 0
    loop: start=0, step=1, limit=4
    $region2: #{tpu_custom_call.1} parent=1 // loop_pre_header
      _
    $region3: #{tpu_custom_call.1} parent=1 // loop_header
      %s21 = sphi 0, %s25
      %p22 = scmp.ge.s32.totalorder %s21, 4
      %s31 = sphi 0, %s33
      %s34 = sphi 0, %s31
      %s35 = sphi 0, %s34
      %s51 = sphi 0, %s35
      %s57 = sphi 0, %s59
      %s60 = sphi 0, %s57
      %s61 = sphi 0, %s60
      %s77 = sphi 0, %s61
      %s81 = sphi 0, %s81
      %s83 = sphi 0, %s81
      %s84 = sphi 0, %s83
      %s98 = sphi 0, %s84
      %s102 = sphi 0, %s102
      %s104 = sphi 0, %s102
      %s105 = sphi 0, %s104
      %s119 = sphi 0, %s105
      %s123 = sphi 0, %s123
      %s125 = sphi 0, %s123
      %s126 = sphi 0, %s125
      %s140 = sphi 0, %s126
      %s144 = sphi 0, %s144
      %s146 = sphi 0, %s144
      %s147 = sphi 0, %s146
      %s161 = sphi 0, %s147
      %s167 = sphi 0, %s169
      %s170 = sphi 0, %s167
      %s171 = sphi 0, %s170
      %s187 = sphi 0, %s171
    $region4: #{tpu_custom_call.1} parent=1 // loop_header_branch
      %24 = sbr.rel (%p22) target = $region8
    $region5: #{tpu_custom_call.1} parent=1 // loop_body
      %s26 = ssub.s32 %s21, 1
      %s27 = ssub.s32 %s21, 2
      %s28 = sadd.s32 %s21, 1
      %s29 = ssub.s32 %s21, %s28
      %p30 = scmp.eq.s32.totalorder %s29, 0
      %s32 = sadd.s32 %s31, 1
      %s33 = scalar_select %p30, %s31, %s32
      %p36 = pneg %p30
      %p37 = scmp.eq.s32.totalorder %s21, 1
      %p38 = por %p36, %p37
      %p39 = scmp.ne.s32.totalorder %s31, %s34
      %p40 = scmp.eq.s32.totalorder %s21, 0
      %p41 = por %p39, %p40
      %p42 = scmp.ne.s32.totalorder %s31, %s34
      %p43 = scmp.eq.s32.totalorder %s26, 1
      %p44 = por %p42, %p43
      %p45 = scmp.ne.s32.totalorder %s34, %s35
      %p46 = scmp.eq.s32.totalorder %s26, 0
      %p47 = por %p45, %p46
      %p48 = scmp.ne.s32.totalorder %s34, %s35
      %p49 = scmp.eq.s32.totalorder %s27, 1
      %p50 = por %p48, %p49
      %p52 = scmp.ne.s32.totalorder %s35, %s51
      %p53 = scmp.eq.s32.totalorder %s27, 0
      %p54 = por %p52, %p53
      %s55 = ssub.s32 %s21, %s28
      %p56 = scmp.eq.s32.totalorder %s55, 0
      %s58 = sadd.s32 %s57, 1
      %s59 = scalar_select %p56, %s57, %s58
      %p62 = pneg %p56
      %p63 = scmp.eq.s32.totalorder %s21, 1
      %p64 = por %p62, %p63
      %p65 = scmp.ne.s32.totalorder %s57, %s60
      %p66 = scmp.eq.s32.totalorder %s21, 0
      %p67 = por %p65, %p66
      %p68 = scmp.ne.s32.totalorder %s57, %s60
      %p69 = scmp.eq.s32.totalorder %s26, 1
      %p70 = por %p68, %p69
      %p71 = scmp.ne.s32.totalorder %s60, %s61
      %p72 = scmp.eq.s32.totalorder %s26, 0
      %p73 = por %p71, %p72
      %p74 = scmp.ne.s32.totalorder %s60, %s61
      %p75 = scmp.eq.s32.totalorder %s27, 1
      %p76 = por %p74, %p75
      %p78 = scmp.ne.s32.totalorder %s61, %s77
      %p79 = scmp.eq.s32.totalorder %s27, 0
      %p80 = por %p78, %p79
      %s82 = sadd.s32 %s81, 1
      %p85 = scmp.eq.s32.totalorder %s21, 1
      %p86 = scmp.ne.s32.totalorder %s81, %s83
      %p87 = scmp.eq.s32.totalorder %s21, 0
      %p88 = por %p86, %p87
      %p89 = scmp.ne.s32.totalorder %s81, %s83
      %p90 = scmp.eq.s32.totalorder %s26, 1
      %p91 = por %p89, %p90
      %p92 = scmp.ne.s32.totalorder %s83, %s84
      %p93 = scmp.eq.s32.totalorder %s26, 0
      %p94 = por %p92, %p93
      %p95 = scmp.ne.s32.totalorder %s83, %s84
      %p96 = scmp.eq.s32.totalorder %s27, 1
      %p97 = por %p95, %p96
      %p99 = scmp.ne.s32.totalorder %s84, %s98
      %p100 = scmp.eq.s32.totalorder %s27, 0
      %p101 = por %p99, %p100
      %s103 = sadd.s32 %s102, 1
      %p106 = scmp.eq.s32.totalorder %s21, 1
      %p107 = scmp.ne.s32.totalorder %s102, %s104
      %p108 = scmp.eq.s32.totalorder %s21, 0
      %p109 = por %p107, %p108
      %p110 = scmp.ne.s32.totalorder %s102, %s104
      %p111 = scmp.eq.s32.totalorder %s26, 1
      %p112 = por %p110, %p111
      %p113 = scmp.ne.s32.totalorder %s104, %s105
      %p114 = scmp.eq.s32.totalorder %s26, 0
      %p115 = por %p113, %p114
      %p116 = scmp.ne.s32.totalorder %s104, %s105
      %p117 = scmp.eq.s32.totalorder %s27, 1
      %p118 = por %p116, %p117
      %p120 = scmp.ne.s32.totalorder %s105, %s119
      %p121 = scmp.eq.s32.totalorder %s27, 0
      %p122 = por %p120, %p121
      %s124 = sadd.s32 %s123, 1
      %p127 = scmp.eq.s32.totalorder %s21, 1
      %p128 = scmp.ne.s32.totalorder %s123, %s125
      %p129 = scmp.eq.s32.totalorder %s21, 0
      %p130 = por %p128, %p129
      %p131 = scmp.ne.s32.totalorder %s123, %s125
      %p132 = scmp.eq.s32.totalorder %s26, 1
      %p133 = por %p131, %p132
      %p134 = scmp.ne.s32.totalorder %s125, %s126
      %p135 = scmp.eq.s32.totalorder %s26, 0
      %p136 = por %p134, %p135
      %p137 = scmp.ne.s32.totalorder %s125, %s126
      %p138 = scmp.eq.s32.totalorder %s27, 1
      %p139 = por %p137, %p138
      %p141 = scmp.ne.s32.totalorder %s126, %s140
      %p142 = scmp.eq.s32.totalorder %s27, 0
      %p143 = por %p141, %p142
      %s145 = sadd.s32 %s144, 1
      %p148 = scmp.eq.s32.totalorder %s21, 1
      %p149 = scmp.ne.s32.totalorder %s144, %s146
      %p150 = scmp.eq.s32.totalorder %s21, 0
      %p151 = por %p149, %p150
      %p152 = scmp.ne.s32.totalorder %s144, %s146
      %p153 = scmp.eq.s32.totalorder %s26, 1
      %p154 = por %p152, %p153
      %p155 = scmp.ne.s32.totalorder %s146, %s147
      %p156 = scmp.eq.s32.totalorder %s26, 0
      %p157 = por %p155, %p156
      %p158 = scmp.ne.s32.totalorder %s146, %s147
      %p159 = scmp.eq.s32.totalorder %s27, 1
      %p160 = por %p158, %p159
      %p162 = scmp.ne.s32.totalorder %s147, %s161
      %p163 = scmp.eq.s32.totalorder %s27, 0
      %p164 = por %p162, %p163
      %s165 = ssub.s32 %s21, %s28
      %p166 = scmp.eq.s32.totalorder %s165, 0
      %s168 = sadd.s32 %s167, 1
      %s169 = scalar_select %p166, %s167, %s168
      %p172 = pneg %p166
      %p173 = scmp.eq.s32.totalorder %s21, 1
      %p174 = por %p172, %p173
      %p175 = scmp.ne.s32.totalorder %s167, %s170
      %p176 = scmp.eq.s32.totalorder %s21, 0
      %p177 = por %p175, %p176
      %p178 = scmp.ne.s32.totalorder %s167, %s170
      %p179 = scmp.eq.s32.totalorder %s26, 1
      %p180 = por %p178, %p179
      %p181 = scmp.ne.s32.totalorder %s170, %s171
      %p182 = scmp.eq.s32.totalorder %s26, 0
      %p183 = por %p181, %p182
      %p184 = scmp.ne.s32.totalorder %s170, %s171
      %p185 = scmp.eq.s32.totalorder %s27, 1
      %p186 = por %p184, %p185
      %p188 = scmp.ne.s32.totalorder %s171, %s187
      %p189 = scmp.eq.s32.totalorder %s27, 0
      %p190 = por %p188, %p189
      %p191 = scmp.le.s32.totalorder 1, %s21
      %p192 = scmp.lt.s32.totalorder %s21, 3
      %p193 = pnand %p191, %p192
      %p194 = pneg %p193
      // Predicated region
      $region9: #{tpu_custom_call.1} parent=5 // pred_check
        _
      $region10: #{tpu_custom_call.1} parent=5 // pred_check_branch
        %196 = sbr.rel (%p193) target = $region12
      $region11: #{tpu_custom_call.1} parent=5 // pred_region
        %s197 = ssub.s32 %s21, 1
        // Predicated region
        $region13: #{tpu_custom_call.1} parent=11 // pred_check
          %p198 = pneg %p94
        $region14: #{tpu_custom_call.1} parent=11 // pred_check_branch
          %200 = sbr.rel (%p198) target = $region16
        $region15: #{tpu_custom_call.1} parent=11 // pred_region
          %s202 = ssub.s32 2048, 2048
          %203 = vsyncadd [#allocation6], %s202
          %s204 = sshll.u32 [#allocation7], 4
          %s205 = int_to_ptr.vmem [resolvable:$true] %s204
          %210 = dma.hbm_to_vmem [thread:$0]  %s2, 2048, %s205, [#allocation6], 64, 64, 4
        $region16: #{tpu_custom_call.1} parent=11 // pred_fallthru
          _
        // Predicated region
        $region17: #{tpu_custom_call.1} parent=11 // pred_check
          %p211 = pneg %p115
        $region18: #{tpu_custom_call.1} parent=11 // pred_check_branch
          %213 = sbr.rel (%p211) target = $region20
        $region19: #{tpu_custom_call.1} parent=11 // pred_region
          _
        $region20: #{tpu_custom_call.1} parent=11 // pred_fallthru
          _
        // Predicated region
        $region21: #{tpu_custom_call.1} parent=11 // pred_check
          %p214 = pneg %p136
        $region22: #{tpu_custom_call.1} parent=11 // pred_check_branch
          %216 = sbr.rel (%p214) target = $region24
        $region23: #{tpu_custom_call.1} parent=11 // pred_region
          _
        $region24: #{tpu_custom_call.1} parent=11 // pred_fallthru
          _
        // Predicated region
        $region25: #{tpu_custom_call.1} parent=11 // pred_check
          %p217 = pneg %p157
        $region26: #{tpu_custom_call.1} parent=11 // pred_check_branch
          %219 = sbr.rel (%p217) target = $region28
        $region27: #{tpu_custom_call.1} parent=11 // pred_region
          _
        $region28: #{tpu_custom_call.1} parent=11 // pred_fallthru
          _
      $region12: #{tpu_custom_call.1} parent=5 // pred_fallthru
        _
      %p220 = scmp.lt.s32.totalorder %s21, 2
      // Predicated region
      $region29: #{tpu_custom_call.1} parent=5 // pred_check
        %p221 = pneg %p220
      $region30: #{tpu_custom_call.1} parent=5 // pred_check_branch
        %223 = sbr.rel (%p221) target = $region32
      $region31: #{tpu_custom_call.1} parent=5 // pred_region
        // Predicated region
        $region33: #{tpu_custom_call.1} parent=31 // pred_check
          %p224 = pneg %p41
        $region34: #{tpu_custom_call.1} parent=31 // pred_check_branch
          %226 = sbr.rel (%p224) target = $region36
        $region35: #{tpu_custom_call.1} parent=31 // pred_region
          %s227 = sand.u32 %s31, 1
          %s228 = scalar_lea.sflag [#allocation3], %s227
          %s229 = sand.u32 %s31, 1
          %s230 = smul.addr %s229, 32
          %s231 = scalar_lea.vmem [#allocation2], %s230
          %s232 = smul.u32 2, %s21
          %s234 = ssub.s32 512, 512
          %235 = vsyncadd %s228, %s234
          %s236 = smul.addr %s232, 2
          %s237 = smul.addr %s236, 128
          %s238 = scalar_lea.hbm %s0, %s237
          %s239 = sshll.u32 %s231, 4
          %s240 = int_to_ptr.vmem [resolvable:$true] %s239
          %245 = dma.hbm_to_vmem [thread:$0]  %s238, 512, %s240, %s228, 256, 256, 16
        $region36: #{tpu_custom_call.1} parent=31 // pred_fallthru
          _
        // Predicated region
        $region37: #{tpu_custom_call.1} parent=31 // pred_check
          %p246 = pneg %p67
        $region38: #{tpu_custom_call.1} parent=31 // pred_check_branch
          %248 = sbr.rel (%p246) target = $region40
        $region39: #{tpu_custom_call.1} parent=31 // pred_region
          %s249 = sand.u32 %s21, 1
          %s250 = scalar_lea.sflag [#allocation6], %s249
          %s251 = sand.u32 %s57, 1
          %s252 = smul.addr %s251, 16
          %s253 = scalar_lea.vmem [#allocation5], %s252
          %s254 = smul.u32 2, %s21
          %s256 = ssub.s32 256, 256
          %257 = vsyncadd %s250, %s256
          %s258 = smul.addr %s254, 128
          %s259 = scalar_lea.hbm %s1, %s258
          %s260 = sshll.u32 %s253, 4
          %s261 = int_to_ptr.vmem [resolvable:$true] %s260
          %266 = dma.hbm_to_vmem [thread:$0]  %s259, 256, %s261, %s250, 128, 128, 8
        $region40: #{tpu_custom_call.1} parent=31 // pred_fallthru
          _
      $region32: #{tpu_custom_call.1} parent=5 // pred_fallthru
        _
      %p267 = scmp.le.s32.totalorder 1, %s21
      %p268 = scmp.lt.s32.totalorder %s21, 3
      %p269 = pnand %p267, %p268
      %p270 = pneg %p269
      // Predicated region
      $region41: #{tpu_custom_call.1} parent=5 // pred_check
        _
      $region42: #{tpu_custom_call.1} parent=5 // pred_check_branch
        %272 = sbr.rel (%p269) target = $region44
      $region43: #{tpu_custom_call.1} parent=5 // pred_region
        %s273 = ssub.s32 %s21, 1
        %s274 = sand.u32 %s34, 1
        %s275 = scalar_lea.sflag [#allocation3], %s274
        %s276 = sand.u32 %s34, 1
        %s277 = smul.addr %s276, 32
        %s278 = scalar_lea.vmem [#allocation2], %s277
        // Predicated region
        $region45: #{tpu_custom_call.1} parent=43 // pred_check
          %p279 = pneg %p47
        $region46: #{tpu_custom_call.1} parent=43 // pred_check_branch
          %281 = sbr.rel (%p279) target = $region48
        $region47: #{tpu_custom_call.1} parent=43 // pred_region
          %282 = dma.done %s275, 512
        $region48: #{tpu_custom_call.1} parent=43 // pred_fallthru
          _
        %s283 = sand.u32 %s26, 1
        %s284 = scalar_lea.sflag [#allocation6], %s283
        %s285 = sand.u32 %s60, 1
        %s286 = smul.addr %s285, 16
        %s287 = scalar_lea.vmem [#allocation5], %s286
        // Predicated region
        $region49: #{tpu_custom_call.1} parent=43 // pred_check
          %p288 = pneg %p73
        $region50: #{tpu_custom_call.1} parent=43 // pred_check_branch
          %290 = sbr.rel (%p288) target = $region52
        $region51: #{tpu_custom_call.1} parent=43 // pred_region
          %291 = dma.done %s284, 256
        $region52: #{tpu_custom_call.1} parent=43 // pred_fallthru
          _
        // Predicated region
        $region53: #{tpu_custom_call.1} parent=43 // pred_check
          %p292 = pneg %p94
        $region54: #{tpu_custom_call.1} parent=43 // pred_check_branch
          %294 = sbr.rel (%p292) target = $region56
        $region55: #{tpu_custom_call.1} parent=43 // pred_region
          %295 = dma.done [#allocation6], 2048
        $region56: #{tpu_custom_call.1} parent=43 // pred_fallthru
          _
        %s296 = sand.u32 %s34, 1
        %s297 = scalar_lea.sflag [#allocation3], %s296
        %s298 = sand.u32 %s34, 1
        %s299 = smul.addr %s298, 32
        %s300 = scalar_lea.vmem [#allocation2], %s299
        %p301 = pneg %p47
        %p302 = pneg %p44
        %s303 = sand.u32 %s26, 1
        %s304 = scalar_lea.sflag [#allocation6], %s303
        %s305 = sand.u32 %s60, 1
        %s306 = smul.addr %s305, 16
        %s307 = scalar_lea.vmem [#allocation5], %s306
        %p308 = pneg %p73
        %p309 = pneg %p70
        %p310 = pneg %p94
        %p311 = pneg %p91
        %p312 = pneg %p115
        %p313 = pneg %p112
        %p314 = pneg %p136
        %p315 = pneg %p133
        %p316 = pneg %p157
        %p317 = pneg %p154
        %p318 = pneg %p183
        %p319 = pneg %p180
        %s320 = sand.u32 %s170, 1
        %s321 = scalar_lea.sflag [#allocation4], %s320
        %s322 = sand.u32 %s170, 1
        %s323 = smul.addr %s322, 16
        %s324 = scalar_lea.vmem [#allocation8], %s323
        %s325 = smul.u32 2, %s26
        %s326 = smul.u32 2, %s26
        %s327 = smul.u32 2, %s26
        %v329 = vld [vmem:[#allocation7] sm:$0xf]
        %v330 = vld [vmem:[#allocation7 + $0x4] sm:$0xf]
        %v331 = vld [vmem:[#allocation7 + $0x8] sm:$0xf]
        %v332 = vld [vmem:[#allocation7 + $0xc] sm:$0xf]
        %v333 = vld [vmem:[#allocation7 + $0x10] sm:$0xf]
        %v334 = vld [vmem:[#allocation7 + $0x14] sm:$0xf]
        %v335 = vld [vmem:[#allocation7 + $0x18] sm:$0xf]
        %v336 = vld [vmem:[#allocation7 + $0x1c] sm:$0xf]
        %v337 = vld [vmem:[#allocation7 + $0x20] sm:$0xf]
        %v338 = vld [vmem:[#allocation7 + $0x24] sm:$0xf]
        %v339 = vld [vmem:[#allocation7 + $0x28] sm:$0xf]
        %v340 = vld [vmem:[#allocation7 + $0x2c] sm:$0xf]
        %v341 = vld [vmem:[#allocation7 + $0x30] sm:$0xf]
        %v342 = vld [vmem:[#allocation7 + $0x34] sm:$0xf]
        %v343 = vld [vmem:[#allocation7 + $0x38] sm:$0xf]
        %v344 = vld [vmem:[#allocation7 + $0x3c] sm:$0xf]
        %v345 = vld [vmem:[#allocation7 + $0x40] sm:$0xf]
        %v346 = vld [vmem:[#allocation7 + $0x44] sm:$0xf]
        %v347 = vld [vmem:[#allocation7 + $0x48] sm:$0xf]
        %v348 = vld [vmem:[#allocation7 + $0x4c] sm:$0xf]
        %v349 = vld [vmem:[#allocation7 + $0x50] sm:$0xf]
        %v350 = vld [vmem:[#allocation7 + $0x54] sm:$0xf]
        %v351 = vld [vmem:[#allocation7 + $0x58] sm:$0xf]
        %v352 = vld [vmem:[#allocation7 + $0x5c] sm:$0xf]
        %v353 = vld [vmem:[#allocation7 + $0x60] sm:$0xf]
        %v354 = vld [vmem:[#allocation7 + $0x64] sm:$0xf]
        %v355 = vld [vmem:[#allocation7 + $0x68] sm:$0xf]
        %v356 = vld [vmem:[#allocation7 + $0x6c] sm:$0xf]
        %v357 = vld [vmem:[#allocation7 + $0x70] sm:$0xf]
        %v358 = vld [vmem:[#allocation7 + $0x74] sm:$0xf]
        %v359 = vld [vmem:[#allocation7 + $0x78] sm:$0xf]
        %v360 = vld [vmem:[#allocation7 + $0x7c] sm:$0xf]
        %v361 = vld [vmem:[%s3] sm:$0x1]
        %v362 = vld [vmem:[%s4] sm:$0x1]
        %v363 = vld [vmem:[%s5] sm:$0x1]
        %v364 = vld [vmem:[%s278] sm:$0xff]
        %v365 = vld [vmem:[%s278 + $0x8] sm:$0xff]
        %v366 = vld [vmem:[%s278 + $0x10] sm:$0xff]
        %v367 = vld [vmem:[%s278 + $0x18] sm:$0xff]
        %v368 = vpack.c.bf16 %v366, %v364
        %v369 = vpack.c.bf16 %v367, %v365
        %v371 = vlaneseq
        %v372 = vshrl.u32 %v371, 7
        %v373 = vsub.s32 0, %v372
        %v374 = vrot.slane %v361, %v373
        %v408 = vunpack.c.l.b16 %v329
        %v409 = vunpack.c.l.b16 %v330
        %v410 = vunpack.c.l.b16 %v331
        %v411 = vunpack.c.l.b16 %v332
        %v412 = vunpack.c.l.b16 %v333
        %v413 = vunpack.c.l.b16 %v334
        %v414 = vunpack.c.l.b16 %v335
        %v415 = vunpack.c.l.b16 %v336
        %v416 = vunpack.c.l.b16 %v337
        %v417 = vunpack.c.l.b16 %v338
        %v418 = vunpack.c.l.b16 %v339
        %v419 = vunpack.c.l.b16 %v340
        %v420 = vunpack.c.l.b16 %v341
        %v421 = vunpack.c.l.b16 %v342
        %v422 = vunpack.c.l.b16 %v343
        %v423 = vunpack.c.l.b16 %v344
        %v424 = vunpack.c.l.b16 %v345
        %v425 = vunpack.c.l.b16 %v346
        %v426 = vunpack.c.l.b16 %v347
        %v427 = vunpack.c.l.b16 %v348
        %v428 = vunpack.c.l.b16 %v349
        %v429 = vunpack.c.l.b16 %v350
        %v430 = vunpack.c.l.b16 %v351
        %v431 = vunpack.c.l.b16 %v352
        %v432 = vunpack.c.l.b16 %v353
        %v433 = vunpack.c.l.b16 %v354
        %v434 = vunpack.c.l.b16 %v355
        %v435 = vunpack.c.l.b16 %v356
        %v436 = vunpack.c.l.b16 %v357
        %v437 = vunpack.c.l.b16 %v358
        %v438 = vunpack.c.l.b16 %v359
        %v439 = vunpack.c.l.b16 %v360
        %v440 = vpack.c.b16 %v409, %v408
        %v441 = vpack.c.b16 %v411, %v410
        %v442 = vpack.c.b16 %v413, %v412
        %v443 = vpack.c.b16 %v415, %v414
        %v444 = vpack.c.b16 %v417, %v416
        %v445 = vpack.c.b16 %v419, %v418
        %v446 = vpack.c.b16 %v421, %v420
        %v447 = vpack.c.b16 %v423, %v422
        %v448 = vpack.c.b16 %v425, %v424
        %v449 = vpack.c.b16 %v427, %v426
        %v450 = vpack.c.b16 %v429, %v428
        %v451 = vpack.c.b16 %v431, %v430
        %v452 = vpack.c.b16 %v433, %v432
        %v453 = vpack.c.b16 %v435, %v434
        %v454 = vpack.c.b16 %v437, %v436
        %v455 = vpack.c.b16 %v439, %v438
        %472 = vmatprep.subr.bf16.mxu0 0
        %473 = vmatpush1.bf16.msra.mxu0 %v440
        %474 = vmatprep.subr.bf16.mxu0 0
        %475 = vmatpush1.bf16.msra.mxu0 %v441
        %476 = vmatprep.subr.bf16.mxu0 0
        %477 = vmatpush1.bf16.msra.mxu0 %v442
        %478 = vmatprep.subr.bf16.mxu0 0
        %479 = vmatpush1.bf16.msra.mxu0 %v443
        %480 = vmatprep.subr.bf16.mxu0 0
        %481 = vmatpush1.bf16.msra.mxu0 %v444
        %482 = vmatprep.subr.bf16.mxu0 0
        %483 = vmatpush1.bf16.msra.mxu0 %v445
        %484 = vmatprep.subr.bf16.mxu0 0
        %485 = vmatpush1.bf16.msra.mxu0 %v446
        %486 = vmatprep.subr.bf16.mxu0 0
        %487 = vmatpush1.bf16.msra.mxu0 %v447
        %488 = vmatprep.subr.bf16.mxu0 0
        %489 = vmatpush1.bf16.msra.mxu0 %v448
        %490 = vmatprep.subr.bf16.mxu0 0
        %491 = vmatpush1.bf16.msra.mxu0 %v449
        %492 = vmatprep.subr.bf16.mxu0 0
        %493 = vmatpush1.bf16.msra.mxu0 %v450
        %494 = vmatprep.subr.bf16.mxu0 0
        %495 = vmatpush1.bf16.msra.mxu0 %v451
        %496 = vmatprep.subr.bf16.mxu0 0
        %497 = vmatpush1.bf16.msra.mxu0 %v452
        %498 = vmatprep.subr.bf16.mxu0 0
        %499 = vmatpush1.bf16.msra.mxu0 %v453
        %500 = vmatprep.subr.bf16.mxu0 0
        %501 = vmatpush1.bf16.msra.mxu0 %v454
        %502 = vmatprep.subr.bf16.mxu0 0
        %503 = vmatpush1.bf16.msra.mxu0 %v455
        %504 = vmatprep.mubr.bf16.mxu0 %v369
        %505 = vmatmul.mubr.bf16.gmra.mrb[0].mxu0 %v368
        %v506 = vpop.f32.mrb[0].mxu0
        %v507 = vadd.f32 %v374, %v506
        %v508 = vpop.f32.mrb[0].mxu0
        %v509 = vpop.f32.mrb[0].mxu0
        %v510 = vadd.f32 %v374, %v509
        %v511 = vpop.f32.mrb[0].mxu0
        %512 = vdwg.mxu0
        %v513 = vld [vmem:[%s287] sm:$0xff]
        %v514 = vld [vmem:[%s287 + $0x8] sm:$0xff]
        %v515 = vadd.f32 %v507, %v513
        %v516 = vadd.f32 %v510, %v514
        %517 = vadd.xlane.f32.xlu0 %v515
        %v518 = vpop.xlane.xlu0 %517
        %519 = vadd.xlane.f32.xlu0 %v516
        %v520 = vpop.xlane.xlu0 %519
        %v521 = vrcp.pop 128.0
        %v522 = vmul.f32 %v518, %v521
        %v523 = vmul.f32 %v520, %v521
        %v524 = vsub.f32 %v515, %v522
        %v525 = vsub.f32 %v516, %v523
        %v526 = vmul.f32 %v524, %v524
        %v527 = vmul.f32 %v525, %v525
        %528 = vadd.xlane.f32.xlu0 %v526
        %v529 = vpop.xlane.xlu0 %528
        %530 = vadd.xlane.f32.xlu0 %v527
        %v531 = vpop.xlane.xlu0 %530
        %v532 = vmul.f32 %v529, %v521
        %v533 = vmul.f32 %v531, %v521
        %v534 = vadd.f32 %v532, 1e-12
        %v535 = vadd.f32 %v533, 1e-12
        %v536 = vrsqrt.pop %v534
        %v537 = vrsqrt.pop %v535
        %v539 = vlaneseq
        %v540 = vshrl.u32 %v539, 7
        %v541 = vsub.s32 0, %v540
        %v542 = vrot.slane %v362, %v541
        %v544 = vmul.f32 %v536, %v542
        %v545 = vmul.f32 %v537, %v542
        %v546 = vmul.f32 %v524, %v544
        %v547 = vmul.f32 %v525, %v545
        %v549 = vlaneseq
        %v550 = vshrl.u32 %v549, 7
        %v551 = vsub.s32 0, %v550
        %v552 = vrot.slane %v363, %v551
        %v554 = vadd.f32 %v546, %v552
        %v555 = vadd.f32 %v547, %v552
        %556 = vst [vmem:[%s324] sm:$0xff] %v554
        %557 = vst [vmem:[%s324 + $0x8] sm:$0xff] %v555
        %s558 = sand.u32 %s170, 1
        %s559 = scalar_lea.sflag [#allocation4], %s558
        %s560 = sand.u32 %s170, 1
        %s561 = smul.addr %s560, 16
        %s562 = scalar_lea.vmem [#allocation8], %s561
        // Predicated region
        $region57: #{tpu_custom_call.1} parent=43 // pred_check
          %p563 = pneg %p180
        $region58: #{tpu_custom_call.1} parent=43 // pred_check_branch
          %565 = sbr.rel (%p563) target = $region60
        $region59: #{tpu_custom_call.1} parent=43 // pred_region
          %s566 = smul.u32 2, %s26
          %s568 = ssub.s32 256, 256
          %569 = vsyncadd %s559, %s568
          %s570 = smul.addr %s566, 128
          %s571 = scalar_lea.hbm %s6, %s570
          %s572 = sshll.u32 %s562, 4
          %s573 = int_to_ptr.vmem [resolvable:$true] %s572
          %578 = dma.vmem_to_hbm [thread:$0]  %s573, 256, %s571, %s559, 128, 128, 8
        $region60: #{tpu_custom_call.1} parent=43 // pred_fallthru
          _
      $region44: #{tpu_custom_call.1} parent=5 // pred_fallthru
        _
      %p579 = scmp.le.s32.totalorder 2, %s21
      // Predicated region
      $region61: #{tpu_custom_call.1} parent=5 // pred_check
        %p580 = pneg %p579
      $region62: #{tpu_custom_call.1} parent=5 // pred_check_branch
        %582 = sbr.rel (%p580) target = $region64
      $region63: #{tpu_custom_call.1} parent=5 // pred_region
        %s583 = ssub.s32 %s21, 2
        // Predicated region
        $region65: #{tpu_custom_call.1} parent=63 // pred_check
          %p584 = pneg %p186
        $region66: #{tpu_custom_call.1} parent=63 // pred_check_branch
          %586 = sbr.rel (%p584) target = $region68
        $region67: #{tpu_custom_call.1} parent=63 // pred_region
          %s587 = sand.u32 %s171, 1
          %s588 = scalar_lea.sflag [#allocation4], %s587
          %s589 = sand.u32 %s171, 1
          %s590 = smul.addr %s589, 16
          %s591 = scalar_lea.vmem [#allocation8], %s590
          %592 = dma.done %s588, 256
        $region68: #{tpu_custom_call.1} parent=63 // pred_fallthru
          _
      $region64: #{tpu_custom_call.1} parent=5 // pred_fallthru
        _
    $region6: #{tpu_custom_call.1} parent=1 // loop_footer
      %s25 = sadd.s32 1, %s21
    $region7: #{tpu_custom_call.1} parent=1 // loop_footer_branch
      %20 = sbr.rel target = $region3
    $region8: #{tpu_custom_call.1} parent=1 // loop_exit
      _
    %593 = vsyncpa [#allocation3], 1
    %s594 = scalar_lea.sflag [#allocation3], 1
    %595 = vsyncpa %s594, 1
    %596 = vsyncpa [#allocation6], 1
    %s597 = scalar_lea.sflag [#allocation6], 1
    %598 = vsyncpa %s597, 1
    %599 = vsyncpa [#allocation4], 1
    %s600 = scalar_lea.sflag [#allocation4], 1
    %601 = vsyncpa %s600, 1

</llo_original>
